<compile_context>
chip_gen: v5e
topology: v5e:2x2
jax: 0.10.0
libtpu: 0.0.40
codegen_flags: <defaults>
</compile_context>

<pallas_src>
import math
from functools import partial

import jax
import jax.numpy as jnp
from jax.experimental import pallas as pl
from jax.experimental.pallas import tpu as pltpu

_LANE = 128
_SUBLANE = 8


def _pixel_norm_kernel(x_ref, o_ref, *, eps, scale):
    # Block: (BP, C, tS, 128). C is a leading dim, so the reduction over it is
    # plain VPU adds across fully dense (sublane, lane) vregs.
    x = x_ref[...].astype(jnp.float32)
    ss = jnp.sum(x * x, axis=1, keepdims=True)              # (BP, 1, tS, 128)
    # F.normalize: x / max(||x||, eps) == x * rsqrt(max(||x||^2, eps^2))
    inv = jax.lax.rsqrt(jnp.maximum(ss, eps * eps))          # EUP slot, ~free
    o_ref[...] = (x * (inv * scale)).astype(o_ref.dtype)


def _largest_divisor_at_most(n, cap):
    cap = max(1, min(n, cap))
    for d in range(cap, 0, -1):
        if n % d == 0:
            return d
    return 1


def _choose_tiling(B, C, S, itemsize, budget_bytes):
    """Pick (BP, tS) so one block buffer is <= budget_bytes and tiles legally.

    Returns None if S > budget and has no multiple-of-8 divisor under it
    (caller then pads S to a multiple of 8 and retries).
    """
    row_bytes = C * _LANE * itemsize            # bytes per unit of tS at BP=1
    max_ts = max(_SUBLANE, budget_bytes // row_bytes)
    if S <= max_ts:
        ts = S                                   # full extent: always legal
    else:
        ts = None
        t = (max_ts // _SUBLANE) * _SUBLANE
        while t >= _SUBLANE:
            if S % t == 0:
                ts = t
                break
            t -= _SUBLANE
        if ts is None:
            return None
    bp_cap = max(1, budget_bytes // max(1, C * ts * _LANE * itemsize))
    bp = _largest_divisor_at_most(B, bp_cap)
    return bp, ts


def _reference_pixel_norm(x, dim=1, eps=1e-4):
    # Pure-JAX mirror of F.normalize(x, dim=dim, eps=eps) * sqrt(x.shape[dim])
    xf = x.astype(jnp.float32)
    norm = jnp.sqrt(jnp.sum(xf * xf, axis=dim, keepdims=True))
    out = xf / jnp.maximum(norm, eps) * math.sqrt(x.shape[dim])
    return out.astype(x.dtype)


def pixel_norm(x, *, dim=1, eps=1e-4, use_pallas=None,
               block_budget_bytes=2 << 20):
    """Pallas PixelNorm over the channel axis of an NCHW tensor."""
    if x.ndim != 4 or dim not in (1, -3):
        raise NotImplementedError("only channel dim (dim=1) of NCHW is supported")
    B, C, H, W = x.shape
    HW = H * W

    # Tiny tensors are 100% launch/pipeline overhead for a custom call.
    if use_pallas is None:
        use_pallas = x.size * jnp.dtype(x.dtype).itemsize >= (256 << 10)
    if not use_pallas:
        return _reference_pixel_norm(x, dim=1, eps=eps)

    itemsize = jnp.dtype(x.dtype).itemsize
    scale = math.sqrt(float(C))

    # Lay the flattened spatial axis out as (S, 128): lanes fast, spatial rows
    # on sublanes, channels kept off the sublane axis.
    hw_pad = (-HW) % _LANE
    S = (HW + hw_pad) // _LANE
    tiling = _choose_tiling(B, C, S, itemsize, block_budget_bytes)
    if tiling is None:
        # Pad S up to a multiple of 8 so a legal multiple-of-8 tile exists.
        hw_pad = (-HW) % (_SUBLANE * _LANE)
        S = (HW + hw_pad) // _LANE
        tiling = _choose_tiling(B, C, S, itemsize, block_budget_bytes)
    BP, tS = tiling

    x3 = x.reshape(B, C, HW)
    if hw_pad:
        # Padded pixels are all-zero across C -> normalize to exactly 0; no
        # effect on valid outputs (sliced off below).
        x3 = jnp.pad(x3, ((0, 0), (0, 0), (0, hw_pad)))
    x4 = x3.reshape(B, C, S, _LANE)

    grid = (B // BP, S // tS)
    kernel = partial(_pixel_norm_kernel, eps=float(eps), scale=scale)

    out = pl.pallas_call(
        kernel,
        out_shape=jax.ShapeDtypeStruct((B, C, S, _LANE), x.dtype),
        grid_spec=pltpu.PrefetchScalarGridSpec(
            num_scalar_prefetch=0,
            grid=grid,
            in_specs=[pl.BlockSpec((BP, C, tS, _LANE), lambda i, j: (i, 0, j, 0))],
            out_specs=pl.BlockSpec((BP, C, tS, _LANE), lambda i, j: (i, 0, j, 0)),
        ),
        compiler_params=pltpu.CompilerParams(
            dimension_semantics=("parallel", "parallel"),
            vmem_limit_bytes=32 * 1024 * 1024,
        ),
    )(x4)

    out = out.reshape(B, C, S * _LANE)
    if hw_pad:
        out = out[:, :, :HW]
    return out.reshape(B, C, H, W)


if __name__ == "__main__":
    B, C, H, W = 2, 4, 16, 16
    key = jax.random.PRNGKey(0)
    x = jax.random.uniform(key, (B, C, H, W), dtype=jnp.float32)

    ref = _reference_pixel_norm(x, dim=1, eps=1e-4)

    # Force the Pallas path even at this tiny shape so the kernel is exercised.
    out = pixel_norm(x, dim=1, eps=1e-4, use_pallas=True)
    jax.block_until_ready(out)
    assert out.shape == ref.shape, (out.shape, ref.shape)
    assert jnp.allclose(out, ref, rtol=1e-4, atol=1e-5), \
        float(jnp.max(jnp.abs(out - ref)))

    # Auto path: tiny inputs take the fused pure-JAX fast path.
    out_auto = pixel_norm(x, dim=1, eps=1e-4)
    jax.block_until_ready(out_auto)
    assert jnp.allclose(out_auto, ref, rtol=1e-4, atol=1e-5)

    print("KERNEL_OK")
</pallas_src>

<mosaic_0001>
module attributes {stable_mosaic.version = 11 : i64} {
  func.func @_pixel_norm_kernel(%arg0: i32, %arg1: i32, %arg2: memref<2x4x2x128xf32, #tpu.memory_space<vmem>>, %arg3: memref<2x4x2x128xf32, #tpu.memory_space<vmem>>) attributes {dimension_semantics = [#tpu.dimension_semantics<parallel>, #tpu.dimension_semantics<parallel>], iteration_bounds = array<i64: 1, 1>, scalar_prefetch = 0 : i64, scratch_operands = 0 : i64, tpu.core_type = #tpu.core_type<tc>, window_params = [{transform_indices = @transform_0, window_bounds = array<i64: 2, 4, 2, 128>}, {transform_indices = @transform_1, window_bounds = array<i64: 2, 4, 2, 128>}]} {
    %c0 = arith.constant 0 : index
    %c0_0 = arith.constant 0 : index
    %c0_1 = arith.constant 0 : index
    %c0_2 = arith.constant 0 : index
    %0 = vector.load %arg2[%c0, %c0_0, %c0_1, %c0_2] : memref<2x4x2x128xf32, #tpu.memory_space<vmem>>, vector<2x4x2x128xf32>
    %1 = arith.mulf %0, %0 : vector<2x4x2x128xf32>
    %cst = arith.constant dense<0.000000e+00> : vector<2x2x128xf32>
    %2 = vector.multi_reduction <add>, %1, %cst [1] : vector<2x4x2x128xf32> to vector<2x2x128xf32>
    %3 = vector.shape_cast %2 : vector<2x2x128xf32> to vector<2x1x2x128xf32>
    %cst_3 = arith.constant 9.99999993E-9 : f32
    %4 = vector.broadcast %cst_3 : f32 to vector<2x1x2x128xf32>
    %5 = arith.maximumf %3, %4 : vector<2x1x2x128xf32>
    %6 = math.rsqrt %5 : vector<2x1x2x128xf32>
    %cst_4 = arith.constant 2.000000e+00 : f32
    %7 = vector.broadcast %cst_4 : f32 to vector<2x1x2x128xf32>
    %8 = arith.mulf %6, %7 : vector<2x1x2x128xf32>
    %9 = vector.broadcast %8 : vector<2x1x2x128xf32> to vector<2x4x2x128xf32>
    %10 = arith.mulf %0, %9 : vector<2x4x2x128xf32>
    %c0_5 = arith.constant 0 : index
    %c0_6 = arith.constant 0 : index
    %c0_7 = arith.constant 0 : index
    %c0_8 = arith.constant 0 : index
    %11 = vector.load %arg3[%c0_5, %c0_6, %c0_7, %c0_8] : memref<2x4x2x128xf32, #tpu.memory_space<vmem>>, vector<2x4x2x128xf32>
    tpu.vector_store %arg3[%c0_5, %c0_6, %c0_7, %c0_8], %10 {strides = array<i32>} : memref<2x4x2x128xf32, #tpu.memory_space<vmem>>, vector<2x4x2x128xf32>,
    return
  }
  func.func @transform_0(%arg0: i32, %arg1: i32) -> (i32, i32, i32, i32) {
    %c0_i32 = arith.constant 0 : i32
    %c0_i32_0 = arith.constant 0 : i32
    %c0_i32_1 = arith.constant 0 : i32
    return %arg0, %c0_i32, %arg1, %c0_i32_0 : i32, i32, i32, i32
  }
  func.func @transform_1(%arg0: i32, %arg1: i32) -> (i32, i32, i32, i32) {
    %c0_i32 = arith.constant 0 : i32
    %c0_i32_0 = arith.constant 0 : i32
    %c0_i32_1 = arith.constant 0 : i32
    return %arg0, %c0_i32, %arg1, %c0_i32_0 : i32, i32, i32, i32
  }
}

</mosaic_0001>

<llo_original>
// kernel: tpu_custom_call.1
$region0: #{tpu_custom_call.1}
  #allocation0 [shape = 'u32[]', space=smem, size = 0x4, offset = 0x4, fixed_abs, tag = 'smem constant byte address 0x4 - core index']
  #allocation1 [shape = 'u32[72,128]{1,0:T(1,128)}', space=vmem, size = 0x9000, scoped, tag = 'internal scratch']
  %s0 = inlined_call_operand.hbm [shape: f32[2,4,2,128], index: 0, kind: input, shape index: {}]
  %s1 = inlined_call_operand.hbm [shape: f32[2,4,2,128], index: 1, kind: output, shape index: {}]
  %s2 = sld [smem:[#allocation0]]
  $region18: #{tpu_custom_call.1} parent=0
    _
  %s4 = ssub.s32 1, %s2
  %s5 = scalar_select 0, %s4, %s2
  $region1: #{tpu_custom_call.1} parent=0
    #allocation2 [shape = 'u8[8192]{0}', space=vmem, size = 0x2000, scoped, tag = 'input window, operand 0, single buffered']
    #allocation3 [shape = 's32[1]{0}', space=sflag, size = 0x4, scoped, tag = 'scoped memory for tpu_custom_call.1']
    #allocation4 [shape = 's32[1]{0}', space=sflag, size = 0x4, scoped, tag = 'scoped memory for tpu_custom_call.1']
    #allocation5 [shape = 'u8[8192]{0}', space=vmem, size = 0x2000, scoped, tag = 'output window, operand 0, single buffered']
    %6 = vsyncpa [#allocation3], 0
    %7 = vsyncpa [#allocation4], 0
    // Predicated region
    $region2: #{tpu_custom_call.1} parent=1 // pred_check
      _
    $region3: #{tpu_custom_call.1} parent=1 // pred_check_branch
      %9 = sbr.rel (0) target = $region5
    $region4: #{tpu_custom_call.1} parent=1 // pred_region
      %11 = vsyncadd [#allocation3], 0
      %s12 = sshll.u32 %s0, 4
      %s13 = int_to_ptr.hbm [resolvable:$true] %s12
      %s14 = sshll.u32 [#allocation2], 4
      %s15 = int_to_ptr.vmem [resolvable:$true] %s14
      %20 = dma.hbm_to_vmem [thread:$0]  %s13, 256, %s15, [#allocation3], 32, 32, 2
    $region5: #{tpu_custom_call.1} parent=1 // pred_fallthru
      _
    // Predicated region
    $region6: #{tpu_custom_call.1} parent=1 // pred_check
      _
    $region7: #{tpu_custom_call.1} parent=1 // pred_check_branch
      %22 = sbr.rel (0) target = $region9
    $region8: #{tpu_custom_call.1} parent=1 // pred_region
      %24 = dma.done [#allocation3], 256
    $region9: #{tpu_custom_call.1} parent=1 // pred_fallthru
      _
    %v25 = vld [vmem:[#allocation2] sm:$0x3]
    %v26 = vld [vmem:[#allocation2 + $0x2] sm:$0x3]
    %v27 = vld [vmem:[#allocation2 + $0x4] sm:$0x3]
    %v28 = vld [vmem:[#allocation2 + $0x6] sm:$0x3]
    %v29 = vld [vmem:[#allocation2 + $0x8] sm:$0x3]
    %v30 = vld [vmem:[#allocation2 + $0xa] sm:$0x3]
    %v31 = vld [vmem:[#allocation2 + $0xc] sm:$0x3]
    %v32 = vld [vmem:[#allocation2 + $0xe] sm:$0x3]
    %v33 = vmul.f32 %v25, %v25
    %v34 = vmul.f32 %v26, %v26
    %v35 = vmul.f32 %v27, %v27
    %v36 = vmul.f32 %v28, %v28
    %v37 = vmul.f32 %v29, %v29
    %v38 = vmul.f32 %v30, %v30
    %v39 = vmul.f32 %v31, %v31
    %v40 = vmul.f32 %v32, %v32
    %vm41 = vcmask 1041408
    %v42 = vsel %vm41, %v33, 0.0
    %v43 = vsel %vm41, %v34, 0.0
    %v44 = vadd.f32 %v42, %v43
    %v45 = vsel %vm41, %v35, 0.0
    %v46 = vadd.f32 %v44, %v45
    %v47 = vsel %vm41, %v36, 0.0
    %v48 = vadd.f32 %v46, %v47
    %v49 = vsel %vm41, %v37, 0.0
    %v50 = vsel %vm41, %v38, 0.0
    %v51 = vadd.f32 %v49, %v50
    %v52 = vsel %vm41, %v39, 0.0
    %v53 = vadd.f32 %v51, %v52
    %v54 = vsel %vm41, %v40, 0.0
    %v55 = vadd.f32 %v53, %v54
    %v56 = vmax.f32 %v48, 1e-08
    %v57 = vmax.f32 %v55, 1e-08
    %v58 = vrsqrt.pop %v56
    %v59 = vmul.f32 %v58, %v56
    %v60 = vmul.f32 %v59, %v58
    %v61 = vmul.f32 0.5, %v60
    %v62 = vsub.f32 1.5, %v61
    %v63 = vmul.f32 %v58, %v62
    %vm64 = vweird.f32 %v56
    %vm65 = vweird.f32 %v58
    %vm66 = vmor %vm64, %vm65
    %v67 = vsel %vm66, %v58, %v63
    %v68 = vrsqrt.pop %v57
    %v69 = vmul.f32 %v68, %v57
    %v70 = vmul.f32 %v69, %v68
    %v71 = vmul.f32 0.5, %v70
    %v72 = vsub.f32 1.5, %v71
    %v73 = vmul.f32 %v68, %v72
    %vm74 = vweird.f32 %v57
    %vm75 = vweird.f32 %v68
    %vm76 = vmor %vm74, %vm75
    %v77 = vsel %vm76, %v68, %v73
    %v78 = vmul.f32 %v67, 2.0
    %v79 = vmul.f32 %v77, 2.0
    %v80 = vmul.f32 %v25, %v78
    %v81 = vmul.f32 %v26, %v78
    %v82 = vmul.f32 %v27, %v78
    %v83 = vmul.f32 %v28, %v78
    %v84 = vmul.f32 %v29, %v79
    %v85 = vmul.f32 %v30, %v79
    %v86 = vmul.f32 %v31, %v79
    %v87 = vmul.f32 %v32, %v79
    %88 = vst [vmem:[#allocation5] sm:$0x3] %v80
    %89 = vst [vmem:[#allocation5 + $0x2] sm:$0x3] %v81
    %90 = vst [vmem:[#allocation5 + $0x4] sm:$0x3] %v82
    %91 = vst [vmem:[#allocation5 + $0x6] sm:$0x3] %v83
    %92 = vst [vmem:[#allocation5 + $0x8] sm:$0x3] %v84
    %93 = vst [vmem:[#allocation5 + $0xa] sm:$0x3] %v85
    %94 = vst [vmem:[#allocation5 + $0xc] sm:$0x3] %v86
    %95 = vst [vmem:[#allocation5 + $0xe] sm:$0x3] %v87
    // Predicated region
    $region10: #{tpu_custom_call.1} parent=1 // pred_check
      _
    $region11: #{tpu_custom_call.1} parent=1 // pred_check_branch
      %97 = sbr.rel (0) target = $region13
    $region12: #{tpu_custom_call.1} parent=1 // pred_region
      %99 = vsyncadd [#allocation4], 0
      %s100 = sshll.u32 [#allocation5], 4
      %s101 = int_to_ptr.vmem [resolvable:$true] %s100
      %s102 = sshll.u32 %s1, 4
      %s103 = int_to_ptr.hbm [resolvable:$true] %s102
      %108 = dma.vmem_to_hbm [thread:$0]  %s101, 256, %s103, [#allocation4], 32, 32, 2
    $region13: #{tpu_custom_call.1} parent=1 // pred_fallthru
      _
    // Predicated region
    $region14: #{tpu_custom_call.1} parent=1 // pred_check
      _
    $region15: #{tpu_custom_call.1} parent=1 // pred_check_branch
      %110 = sbr.rel (0) target = $region17
    $region16: #{tpu_custom_call.1} parent=1 // pred_region
      %112 = dma.done [#allocation4], 256
    $region17: #{tpu_custom_call.1} parent=1 // pred_fallthru
      _
    %113 = vsyncpa [#allocation3], 1
    %114 = vsyncpa [#allocation4], 1

</llo_original>
